<compile_context>
chip_gen: v5e
topology: v5e:2x2
jax: 0.10.0
libtpu: 0.0.40
codegen_flags: <defaults>
</compile_context>

<pallas_src>
import jax
import jax.numpy as jnp
from jax import lax
from jax.experimental import pallas as pl
from jax.experimental.pallas import tpu as pltpu


def _num_tensorcores():
    """Best-effort TensorCores-per-chip (megacore parts shard a 'parallel' grid
    axis across 2 TCs). Only affects tile sizing, never correctness."""
    try:
        kind = jax.devices()[0].device_kind.lower()
    except Exception:
        return 1
    for tag in ("v4", "v5p", "v7", "7x"):
        if tag in kind:
            return 2
    return 1


def _pick_tile_b(batch, n_cores):
    """Fewest grid steps possible: one full-extent tile on single-TC parts,
    two balanced multiple-of-128 tiles on 2-TC parts, capped for huge batches."""
    if n_cores >= 2 and batch % 256 == 0:
        tile = batch // 2
    else:
        tile = batch
    max_tile = 8192  # per-tile VMEM stays trivial far below this anyway
    if tile > max_tile:
        for cand in range(max_tile, 0, -128):
            if batch % cand == 0:
                tile = cand
                break
    return tile


def _make_dnn4_kernel(n_layers, epilogue_dtype, last_vpu):
    """Fused kernel. Refs: (x_ref, w1, b1, ..., wN, bN, o_ref)
      x_ref : [tile_b, in_dim]   (native layout; batch on sublanes only here)
      w_i   : [out_f, in_f]      (pre-cast to MXU dtype in the wrapper)
      b_i   : [out_f, 1]         (f32 column, broadcasts along lanes)
      wN    : [hidden, 1] f32    when last_vpu (pre-transposed in wrapper)
      o_ref : [out_dim, tile_b]  (lane-dense output slab)
    """

    def kernel(*refs):
        x_ref = refs[0]
        o_ref = refs[-1]
        wb = refs[1:-1]

        # ---- layer 1: contract in_dim of W[hid, in] with x[tile_b, in]
        #      -> [hid, tile_b]; batch lands on lanes with no wrapper transpose.
        w0 = wb[0][...]
        h = lax.dot_general(
            w0, x_ref[...].astype(w0.dtype),
            dimension_numbers=(((1,), (1,)), ((), ())),
            preferred_element_type=jnp.float32)
        h = jnp.tanh((h + wb[1][...]).astype(epilogue_dtype))

        # ---- hidden layers (MXU matmul, f32 accumulation, tanh on the EUP)
        for li in range(1, n_layers - 1):
            w = wb[2 * li][...]
            b = wb[2 * li + 1][...]
            h = jnp.dot(w, h.astype(w.dtype), preferred_element_type=jnp.float32)
            h = jnp.tanh((h + b).astype(epilogue_dtype))

        # ---- final layer (no tanh)
        w = wb[2 * (n_layers - 1)][...]
        b = wb[2 * (n_layers - 1) + 1][...]
        if last_vpu:
            # out_dim == 1: broadcast-multiply (VPU) + sublane reduce (XLU)
            # instead of a 1-result-row MXU matmul with full fill/drain cost.
            y = jnp.sum(w * h.astype(jnp.float32), axis=0, keepdims=True) + b
        else:
            y = jnp.dot(w, h.astype(w.dtype),
                        preferred_element_type=jnp.float32) + b
        o_ref[...] = y.astype(o_ref.dtype)

    return kernel


def dnn4_forward(x, params, *, tile_b=None, mxu_dtype=jnp.bfloat16,
                 epilogue_dtype=jnp.float32):
    """Fused DNN4 forward.

    x:      [B, input_size] float32
    params: (w1, b1, ..., wN, bN) in PyTorch layout, w_i: [out_f, in_f],
            b_i: [out_f] (or [out_f, 1]).
    Returns [B, output_size] float32.
    """
    assert len(params) % 2 == 0 and len(params) >= 4
    n_layers = len(params) // 2
    B, in_dim = x.shape
    out_dim = params[-2].shape[0]

    if tile_b is None:
        tile_b = _pick_tile_b(B, _num_tensorcores())
    if tile_b != B:
        assert tile_b % 128 == 0, "lane-axis batch tile must be a multiple of 128"
        assert B % tile_b == 0, "batch must be divisible by the batch tile"
    grid = (B // tile_b,)

    last_vpu = (out_dim == 1)

    # One-time wrapper-side parameter plumbing (tiny tensors, negligible cost):
    #   * MXU weights pre-cast to mxu_dtype (no per-step in-kernel cast),
    #   * biases reshaped to [out, 1] f32 columns (broadcast along lanes),
    #   * final [1, hidden] weight pre-transposed to an f32 [hidden, 1] column
    #     for the VPU/XLU reduce path.
    kparams = []
    for li in range(n_layers):
        w = params[2 * li]
        b = params[2 * li + 1].reshape(-1, 1).astype(jnp.float32)
        if li == n_layers - 1 and last_vpu:
            w = w.T.astype(jnp.float32)
        else:
            w = w.astype(mxu_dtype)
        kparams += [w, b]

    # Whole-array blocks with constant index_map: fetched once, resident
    # across every batch tile.
    def full_spec(arr):
        return pl.BlockSpec(arr.shape, lambda i: (0, 0))

    in_specs = [pl.BlockSpec((tile_b, in_dim), lambda i: (i, 0))]  # x, native
    in_specs += [full_spec(p) for p in kparams]

    yT = pl.pallas_call(
        _make_dnn4_kernel(n_layers, epilogue_dtype, last_vpu),
        out_shape=jax.ShapeDtypeStruct((out_dim, B), x.dtype),
        grid_spec=pltpu.PrefetchScalarGridSpec(
            num_scalar_prefetch=0,
            grid=grid,
            in_specs=in_specs,
            out_specs=pl.BlockSpec((out_dim, tile_b), lambda i: (0, i)),
        ),
        compiler_params=pltpu.CompilerParams(
            dimension_semantics=("parallel",)),
    )(x, *kparams)

    return yT.T  # [B, out_dim] -- tiny transpose of a [out_dim, B] slab


def init_dnn4_params(key, input_size, hidden_size, output_size, hidden_num):
    """PyTorch nn.Linear default init: U(-1/sqrt(fan_in), 1/sqrt(fan_in)).
    Weights in PyTorch layout [out, in], biases as [out]."""
    dims = [(input_size, hidden_size)]
    dims += [(hidden_size, hidden_size)] * (hidden_num - 1)
    dims += [(hidden_size, output_size)]

    params = []
    keys = jax.random.split(key, 2 * len(dims))
    for li, (fan_in, fan_out) in enumerate(dims):
        bound = 1.0 / (fan_in ** 0.5)
        w = jax.random.uniform(keys[2 * li], (fan_out, fan_in),
                               minval=-bound, maxval=bound, dtype=jnp.float32)
        b = jax.random.uniform(keys[2 * li + 1], (fan_out,),
                               minval=-bound, maxval=bound, dtype=jnp.float32)
        params += [w, b]
    return tuple(params)


def dnn4_reference(x, params):
    """Plain-JAX reference with PyTorch semantics: y = x @ W.T + b."""
    n_layers = len(params) // 2
    h = x
    for li in range(n_layers):
        w = params[2 * li]
        b = params[2 * li + 1]
        h = h @ w.T + b
        if li < n_layers - 1:
            h = jnp.tanh(h)
    return h


if __name__ == "__main__":
    # Hyperelasticity PINN-style MLP: input_size=3 (coords), hidden_size=32,
    # output_size=1, hidden_num=3. Batch is a small multiple of 128 so both
    # the single-big-tile and the 2-balanced-tile (megacore) paths are legal.
    batch, input_size, hidden_size, output_size, hidden_num = 512, 3, 32, 1, 3

    key = jax.random.PRNGKey(0)
    k_x, k_p = jax.random.split(key)
    x = jax.random.normal(k_x, (batch, input_size), dtype=jnp.float32)
    params = init_dnn4_params(k_p, input_size, hidden_size, output_size,
                              hidden_num)

    y_ref = dnn4_reference(x, params)

    # f32 MXU path: tight parity check with the XLA reference.
    y32 = jax.block_until_ready(dnn4_forward(x, params, mxu_dtype=jnp.float32))
    assert y32.shape == (batch, output_size)
    assert jnp.allclose(y32, y_ref, atol=1e-4, rtol=1e-4), float(
        jnp.max(jnp.abs(y32 - y_ref)))

    # Default path: single-pass bf16 MXU inputs, f32 accumulation + epilogue
    # (looser tolerance accounts for bf16 mantissa on the hidden matmuls).
    ybf = jax.block_until_ready(dnn4_forward(x, params))
    assert ybf.shape == (batch, output_size)
    assert jnp.allclose(ybf, y_ref, atol=5e-2, rtol=5e-2), float(
        jnp.max(jnp.abs(ybf - y_ref)))

    print("KERNEL_OK")
</pallas_src>

<mosaic_0001>
module attributes {stable_mosaic.version = 11 : i64} {
  func.func @kernel(%arg0: i32, %arg1: memref<512x3xf32, #tpu.memory_space<vmem>>, %arg2: memref<32x3xf32, #tpu.memory_space<vmem>>, %arg3: memref<32x1xf32, #tpu.memory_space<vmem>>, %arg4: memref<32x32xf32, #tpu.memory_space<vmem>>, %arg5: memref<32x1xf32, #tpu.memory_space<vmem>>, %arg6: memref<32x32xf32, #tpu.memory_space<vmem>>, %arg7: memref<32x1xf32, #tpu.memory_space<vmem>>, %arg8: memref<32x1xf32, #tpu.memory_space<vmem>>, %arg9: memref<1x1xf32, #tpu.memory_space<vmem>>, %arg10: memref<1x512xf32, #tpu.memory_space<vmem>>) attributes {dimension_semantics = [#tpu.dimension_semantics<parallel>], iteration_bounds = array<i64: 1>, scalar_prefetch = 0 : i64, scratch_operands = 0 : i64, tpu.core_type = #tpu.core_type<tc>, window_params = [{transform_indices = @transform_0, window_bounds = array<i64: 512, 3>}, {pipeline_mode = #tpu.pipeline_mode<synchronous>, transform_indices = @transform_1, window_bounds = array<i64: 32, 3>}, {pipeline_mode = #tpu.pipeline_mode<synchronous>, transform_indices = @transform_2, window_bounds = array<i64: 32, 1>}, {pipeline_mode = #tpu.pipeline_mode<synchronous>, transform_indices = @transform_3, window_bounds = array<i64: 32, 32>}, {pipeline_mode = #tpu.pipeline_mode<synchronous>, transform_indices = @transform_4, window_bounds = array<i64: 32, 1>}, {pipeline_mode = #tpu.pipeline_mode<synchronous>, transform_indices = @transform_5, window_bounds = array<i64: 32, 32>}, {pipeline_mode = #tpu.pipeline_mode<synchronous>, transform_indices = @transform_6, window_bounds = array<i64: 32, 1>}, {pipeline_mode = #tpu.pipeline_mode<synchronous>, transform_indices = @transform_7, window_bounds = array<i64: 32, 1>}, {pipeline_mode = #tpu.pipeline_mode<synchronous>, transform_indices = @transform_8, window_bounds = array<i64: 1, 1>}, {transform_indices = @transform_9, window_bounds = array<i64: 1, 512>}]} {
    %c0 = arith.constant 0 : index
    %c0_0 = arith.constant 0 : index
    %0 = vector.load %arg2[%c0, %c0_0] : memref<32x3xf32, #tpu.memory_space<vmem>>, vector<32x3xf32>
    %c0_1 = arith.constant 0 : index
    %c0_2 = arith.constant 0 : index
    %1 = vector.load %arg1[%c0_1, %c0_2] : memref<512x3xf32, #tpu.memory_space<vmem>>, vector<512x3xf32>
    %cst = arith.constant dense<0.000000e+00> : vector<32x512xf32>
    %2 = tpu.matmul %0, %1, %cst {dimension_numbers = #tpu.dot_dimension_numbers<[1], [1], [0], [0], [0, 0, 1, 0], [], []>} : vector<32x3xf32>, vector<512x3xf32>, vector<32x512xf32> -> vector<32x512xf32>
    %c0_3 = arith.constant 0 : index
    %c0_4 = arith.constant 0 : index
    %3 = vector.load %arg3[%c0_3, %c0_4] : memref<32x1xf32, #tpu.memory_space<vmem>>, vector<32x1xf32>
    %4 = vector.broadcast %3 : vector<32x1xf32> to vector<32x512xf32>
    %5 = arith.addf %2, %4 : vector<32x512xf32>
    %6 = math.tanh %5 : vector<32x512xf32>
    %c0_5 = arith.constant 0 : index
    %c0_6 = arith.constant 0 : index
    %7 = vector.load %arg4[%c0_5, %c0_6] : memref<32x32xf32, #tpu.memory_space<vmem>>, vector<32x32xf32>
    %c0_7 = arith.constant 0 : index
    %c0_8 = arith.constant 0 : index
    %8 = vector.load %arg5[%c0_7, %c0_8] : memref<32x1xf32, #tpu.memory_space<vmem>>, vector<32x1xf32>
    %cst_9 = arith.constant dense<0.000000e+00> : vector<32x512xf32>
    %9 = tpu.matmul %7, %6, %cst_9 {dimension_numbers = #tpu.dot_dimension_numbers<[1], [0], [0], [1], [0, 0, 1, 1], [], []>} : vector<32x32xf32>, vector<32x512xf32>, vector<32x512xf32> -> vector<32x512xf32>
    %10 = vector.broadcast %8 : vector<32x1xf32> to vector<32x512xf32>
    %11 = arith.addf %9, %10 : vector<32x512xf32>
    %12 = math.tanh %11 : vector<32x512xf32>
    %c0_10 = arith.constant 0 : index
    %c0_11 = arith.constant 0 : index
    %13 = vector.load %arg6[%c0_10, %c0_11] : memref<32x32xf32, #tpu.memory_space<vmem>>, vector<32x32xf32>
    %c0_12 = arith.constant 0 : index
    %c0_13 = arith.constant 0 : index
    %14 = vector.load %arg7[%c0_12, %c0_13] : memref<32x1xf32, #tpu.memory_space<vmem>>, vector<32x1xf32>
    %cst_14 = arith.constant dense<0.000000e+00> : vector<32x512xf32>
    %15 = tpu.matmul %13, %12, %cst_14 {dimension_numbers = #tpu.dot_dimension_numbers<[1], [0], [0], [1], [0, 0, 1, 1], [], []>} : vector<32x32xf32>, vector<32x512xf32>, vector<32x512xf32> -> vector<32x512xf32>
    %16 = vector.broadcast %14 : vector<32x1xf32> to vector<32x512xf32>
    %17 = arith.addf %15, %16 : vector<32x512xf32>
    %18 = math.tanh %17 : vector<32x512xf32>
    %c0_15 = arith.constant 0 : index
    %c0_16 = arith.constant 0 : index
    %19 = vector.load %arg8[%c0_15, %c0_16] : memref<32x1xf32, #tpu.memory_space<vmem>>, vector<32x1xf32>
    %c0_17 = arith.constant 0 : index
    %c0_18 = arith.constant 0 : index
    %20 = vector.load %arg9[%c0_17, %c0_18] : memref<1x1xf32, #tpu.memory_space<vmem>>, vector<1x1xf32>
    %21 = vector.broadcast %19 : vector<32x1xf32> to vector<32x512xf32>
    %22 = arith.mulf %21, %18 : vector<32x512xf32>
    %cst_19 = arith.constant dense<0.000000e+00> : vector<512xf32>
    %23 = vector.multi_reduction <add>, %22, %cst_19 [0] : vector<32x512xf32> to vector<512xf32>
    %24 = vector.shape_cast %23 : vector<512xf32> to vector<1x512xf32>
    %25 = vector.broadcast %20 : vector<1x1xf32> to vector<1x512xf32>
    %26 = arith.addf %24, %25 : vector<1x512xf32>
    %c0_20 = arith.constant 0 : index
    %c0_21 = arith.constant 0 : index
    %27 = vector.load %arg10[%c0_20, %c0_21] : memref<1x512xf32, #tpu.memory_space<vmem>>, vector<1x512xf32>
    tpu.vector_store %arg10[%c0_20, %c0_21], %26 {strides = array<i32>} : memref<1x512xf32, #tpu.memory_space<vmem>>, vector<1x512xf32>,
    return
  }
  func.func @transform_0(%arg0: i32) -> (i32, i32) {
    %c0_i32 = arith.constant 0 : i32
    %c0_i32_0 = arith.constant 0 : i32
    return %arg0, %c0_i32 : i32, i32
  }
  func.func @transform_1(%arg0: i32) -> (i32, i32) {
    %c0_i32 = arith.constant 0 : i32
    %c0_i32_0 = arith.constant 0 : i32
    %c0_i32_1 = arith.constant 0 : i32
    return %c0_i32, %c0_i32_0 : i32, i32
  }
  func.func @transform_2(%arg0: i32) -> (i32, i32) {
    %c0_i32 = arith.constant 0 : i32
    %c0_i32_0 = arith.constant 0 : i32
    %c0_i32_1 = arith.constant 0 : i32
    return %c0_i32, %c0_i32_0 : i32, i32
  }
  func.func @transform_3(%arg0: i32) -> (i32, i32) {
    %c0_i32 = arith.constant 0 : i32
    %c0_i32_0 = arith.constant 0 : i32
    %c0_i32_1 = arith.constant 0 : i32
    return %c0_i32, %c0_i32_0 : i32, i32
  }
  func.func @transform_4(%arg0: i32) -> (i32, i32) {
    %c0_i32 = arith.constant 0 : i32
    %c0_i32_0 = arith.constant 0 : i32
    %c0_i32_1 = arith.constant 0 : i32
    return %c0_i32, %c0_i32_0 : i32, i32
  }
  func.func @transform_5(%arg0: i32) -> (i32, i32) {
    %c0_i32 = arith.constant 0 : i32
    %c0_i32_0 = arith.constant 0 : i32
    %c0_i32_1 = arith.constant 0 : i32
    return %c0_i32, %c0_i32_0 : i32, i32
  }
  func.func @transform_6(%arg0: i32) -> (i32, i32) {
    %c0_i32 = arith.constant 0 : i32
    %c0_i32_0 = arith.constant 0 : i32
    %c0_i32_1 = arith.constant 0 : i32
    return %c0_i32, %c0_i32_0 : i32, i32
  }
  func.func @transform_7(%arg0: i32) -> (i32, i32) {
    %c0_i32 = arith.constant 0 : i32
    %c0_i32_0 = arith.constant 0 : i32
    %c0_i32_1 = arith.constant 0 : i32
    return %c0_i32, %c0_i32_0 : i32, i32
  }
  func.func @transform_8(%arg0: i32) -> (i32, i32) {
    %c0_i32 = arith.constant 0 : i32
    %c0_i32_0 = arith.constant 0 : i32
    %c0_i32_1 = arith.constant 0 : i32
    return %c0_i32, %c0_i32_0 : i32, i32
  }
  func.func @transform_9(%arg0: i32) -> (i32, i32) {
    %c0_i32 = arith.constant 0 : i32
    %c0_i32_0 = arith.constant 0 : i32
    return %c0_i32, %arg0 : i32, i32
  }
}

</mosaic_0001>

<llo_original>
// kernel: tpu_custom_call.1
$region0: #{tpu_custom_call.1}
  #allocation0 [shape = 'u32[]', space=smem, size = 0x4, offset = 0x4, fixed_abs, tag = 'smem constant byte address 0x4 - core index']
  #allocation1 [shape = 'u32[72,128]{1,0:T(1,128)}', space=vmem, size = 0x9000, scoped, tag = 'internal scratch']
  #allocation2 [shape = 'f32[1,1]{1,0:T(1,128)S(1)}', space=vmem, size = 0x200, scoped, tag = 'scoped memory for tpu_custom_call.1']
  %s0 = inlined_call_operand.vmem [shape: f32[512,3], index: 0, kind: input, shape index: {}]
  %s1 = inlined_call_operand.vmem [shape: f32[32,3], index: 1, kind: input, shape index: {}]
  %s2 = inlined_call_operand.vmem [shape: f32[32,1], index: 2, kind: input, shape index: {}]
  %s3 = inlined_call_operand.vmem [shape: f32[32,32], index: 3, kind: input, shape index: {}]
  %s4 = inlined_call_operand.vmem [shape: f32[32,1], index: 4, kind: input, shape index: {}]
  %s5 = inlined_call_operand.vmem [shape: f32[32,32], index: 5, kind: input, shape index: {}]
  %s6 = inlined_call_operand.vmem [shape: f32[32,1], index: 6, kind: input, shape index: {}]
  %s7 = inlined_call_operand.vmem [shape: f32[32,1], index: 7, kind: input, shape index: {}]
  %s8 = inlined_call_operand.<no memory space> [shape: f32[1,1], index: 8, kind: input, shape index: {}]
  %s9 = inlined_call_operand.hbm [shape: f32[1,512], index: 9, kind: output, shape index: {}]
  %s10 = sld [smem:[#allocation0]]
  $region46: #{tpu_custom_call.1} parent=0
    _
  %s12 = ssub.s32 1, %s10
  %s13 = scalar_select 0, %s12, %s10
  %v14 = vstv %s8
  %15 = vst [vmem:[#allocation2] sm:$0x1] %v14
  $region1: #{tpu_custom_call.1} parent=0
    #allocation3 [shape = 'u8[2048]{0}', space=vmem, size = 0x800, scoped, tag = 'output window, operand 0, single buffered']
    #allocation4 [shape = 's32[1]{0}', space=sflag, size = 0x4, scoped, tag = 'scoped memory for tpu_custom_call.1']
    %16 = vsyncpa [#allocation4], 0
    // Predicated region
    $region2: #{tpu_custom_call.1} parent=1 // pred_check
      _
    $region3: #{tpu_custom_call.1} parent=1 // pred_check_branch
      %18 = sbr.rel (0) target = $region5
    $region4: #{tpu_custom_call.1} parent=1 // pred_region
      _
    $region5: #{tpu_custom_call.1} parent=1 // pred_fallthru
      _
    // Predicated region
    $region6: #{tpu_custom_call.1} parent=1 // pred_check
      _
    $region7: #{tpu_custom_call.1} parent=1 // pred_check_branch
      %20 = sbr.rel (0) target = $region9
    $region8: #{tpu_custom_call.1} parent=1 // pred_region
      _
    $region9: #{tpu_custom_call.1} parent=1 // pred_fallthru
      _
    // Predicated region
    $region10: #{tpu_custom_call.1} parent=1 // pred_check
      _
    $region11: #{tpu_custom_call.1} parent=1 // pred_check_branch
      %22 = sbr.rel (0) target = $region13
    $region12: #{tpu_custom_call.1} parent=1 // pred_region
      _
    $region13: #{tpu_custom_call.1} parent=1 // pred_fallthru
      _
    // Predicated region
    $region14: #{tpu_custom_call.1} parent=1 // pred_check
      _
    $region15: #{tpu_custom_call.1} parent=1 // pred_check_branch
      %24 = sbr.rel (0) target = $region17
    $region16: #{tpu_custom_call.1} parent=1 // pred_region
      _
    $region17: #{tpu_custom_call.1} parent=1 // pred_fallthru
      _
    // Predicated region
    $region18: #{tpu_custom_call.1} parent=1 // pred_check
      _
    $region19: #{tpu_custom_call.1} parent=1 // pred_check_branch
      %26 = sbr.rel (0) target = $region21
    $region20: #{tpu_custom_call.1} parent=1 // pred_region
      _
    $region21: #{tpu_custom_call.1} parent=1 // pred_fallthru
      _
    // Predicated region
    $region22: #{tpu_custom_call.1} parent=1 // pred_check
      _
    $region23: #{tpu_custom_call.1} parent=1 // pred_check_branch
      %28 = sbr.rel (0) target = $region25
    $region24: #{tpu_custom_call.1} parent=1 // pred_region
      _
    $region25: #{tpu_custom_call.1} parent=1 // pred_fallthru
      _
    // Predicated region
    $region26: #{tpu_custom_call.1} parent=1 // pred_check
      _
    $region27: #{tpu_custom_call.1} parent=1 // pred_check_branch
      %30 = sbr.rel (0) target = $region29
    $region28: #{tpu_custom_call.1} parent=1 // pred_region
      _
    $region29: #{tpu_custom_call.1} parent=1 // pred_fallthru
      _
    // Predicated region
    $region30: #{tpu_custom_call.1} parent=1 // pred_check
      _
    $region31: #{tpu_custom_call.1} parent=1 // pred_check_branch
      %32 = sbr.rel (0) target = $region33
    $region32: #{tpu_custom_call.1} parent=1 // pred_region
      _
    $region33: #{tpu_custom_call.1} parent=1 // pred_fallthru
      _
    // Predicated region
    $region34: #{tpu_custom_call.1} parent=1 // pred_check
      _
    $region35: #{tpu_custom_call.1} parent=1 // pred_check_branch
      %34 = sbr.rel (0) target = $region37
    $region36: #{tpu_custom_call.1} parent=1 // pred_region
      _
    $region37: #{tpu_custom_call.1} parent=1 // pred_fallthru
      _
    %v35 = vld [vmem:[%s1] sm:$0xff]
    %v36 = vld [vmem:[%s1 + $0x8] sm:$0xff]
    %v37 = vld [vmem:[%s1 + $0x10] sm:$0xff]
    %v38 = vld [vmem:[%s1 + $0x18] sm:$0xff]
    %v39 = vld [vmem:[%s0] sm:$0xff]
    %v40 = vld [vmem:[%s0 + $0x8] sm:$0xff]
    %v41 = vld [vmem:[%s0 + $0x10] sm:$0xff]
    %v42 = vld [vmem:[%s0 + $0x18] sm:$0xff]
    %v43 = vld [vmem:[%s0 + $0x20] sm:$0xff]
    %v44 = vld [vmem:[%s0 + $0x28] sm:$0xff]
    %v45 = vld [vmem:[%s0 + $0x30] sm:$0xff]
    %v46 = vld [vmem:[%s0 + $0x38] sm:$0xff]
    %v47 = vld [vmem:[%s0 + $0x40] sm:$0xff]
    %v48 = vld [vmem:[%s0 + $0x48] sm:$0xff]
    %v49 = vld [vmem:[%s0 + $0x50] sm:$0xff]
    %v50 = vld [vmem:[%s0 + $0x58] sm:$0xff]
    %v51 = vld [vmem:[%s0 + $0x60] sm:$0xff]
    %v52 = vld [vmem:[%s0 + $0x68] sm:$0xff]
    %v53 = vld [vmem:[%s0 + $0x70] sm:$0xff]
    %v54 = vld [vmem:[%s0 + $0x78] sm:$0xff]
    %v55 = vld [vmem:[%s0 + $0x80] sm:$0xff]
    %v56 = vld [vmem:[%s0 + $0x88] sm:$0xff]
    %v57 = vld [vmem:[%s0 + $0x90] sm:$0xff]
    %v58 = vld [vmem:[%s0 + $0x98] sm:$0xff]
    %v59 = vld [vmem:[%s0 + $0xa0] sm:$0xff]
    %v60 = vld [vmem:[%s0 + $0xa8] sm:$0xff]
    %v61 = vld [vmem:[%s0 + $0xb0] sm:$0xff]
    %v62 = vld [vmem:[%s0 + $0xb8] sm:$0xff]
    %v63 = vld [vmem:[%s0 + $0xc0] sm:$0xff]
    %v64 = vld [vmem:[%s0 + $0xc8] sm:$0xff]
    %v65 = vld [vmem:[%s0 + $0xd0] sm:$0xff]
    %v66 = vld [vmem:[%s0 + $0xd8] sm:$0xff]
    %v67 = vld [vmem:[%s0 + $0xe0] sm:$0xff]
    %v68 = vld [vmem:[%s0 + $0xe8] sm:$0xff]
    %v69 = vld [vmem:[%s0 + $0xf0] sm:$0xff]
    %v70 = vld [vmem:[%s0 + $0xf8] sm:$0xff]
    %v71 = vld [vmem:[%s0 + $0x100] sm:$0xff]
    %v72 = vld [vmem:[%s0 + $0x108] sm:$0xff]
    %v73 = vld [vmem:[%s0 + $0x110] sm:$0xff]
    %v74 = vld [vmem:[%s0 + $0x118] sm:$0xff]
    %v75 = vld [vmem:[%s0 + $0x120] sm:$0xff]
    %v76 = vld [vmem:[%s0 + $0x128] sm:$0xff]
    %v77 = vld [vmem:[%s0 + $0x130] sm:$0xff]
    %v78 = vld [vmem:[%s0 + $0x138] sm:$0xff]
    %v79 = vld [vmem:[%s0 + $0x140] sm:$0xff]
    %v80 = vld [vmem:[%s0 + $0x148] sm:$0xff]
    %v81 = vld [vmem:[%s0 + $0x150] sm:$0xff]
    %v82 = vld [vmem:[%s0 + $0x158] sm:$0xff]
    %v83 = vld [vmem:[%s0 + $0x160] sm:$0xff]
    %v84 = vld [vmem:[%s0 + $0x168] sm:$0xff]
    %v85 = vld [vmem:[%s0 + $0x170] sm:$0xff]
    %v86 = vld [vmem:[%s0 + $0x178] sm:$0xff]
    %v87 = vld [vmem:[%s0 + $0x180] sm:$0xff]
    %v88 = vld [vmem:[%s0 + $0x188] sm:$0xff]
    %v89 = vld [vmem:[%s0 + $0x190] sm:$0xff]
    %v90 = vld [vmem:[%s0 + $0x198] sm:$0xff]
    %v91 = vld [vmem:[%s0 + $0x1a0] sm:$0xff]
    %v92 = vld [vmem:[%s0 + $0x1a8] sm:$0xff]
    %v93 = vld [vmem:[%s0 + $0x1b0] sm:$0xff]
    %v94 = vld [vmem:[%s0 + $0x1b8] sm:$0xff]
    %v95 = vld [vmem:[%s0 + $0x1c0] sm:$0xff]
    %v96 = vld [vmem:[%s0 + $0x1c8] sm:$0xff]
    %v97 = vld [vmem:[%s0 + $0x1d0] sm:$0xff]
    %v98 = vld [vmem:[%s0 + $0x1d8] sm:$0xff]
    %v99 = vld [vmem:[%s0 + $0x1e0] sm:$0xff]
    %v100 = vld [vmem:[%s0 + $0x1e8] sm:$0xff]
    %v101 = vld [vmem:[%s0 + $0x1f0] sm:$0xff]
    %v102 = vld [vmem:[%s0 + $0x1f8] sm:$0xff]
    %v103 = vld [vmem:[%s2] sm:$0xff]
    %v104 = vld [vmem:[%s2 + $0x8] sm:$0xff]
    %v105 = vld [vmem:[%s2 + $0x10] sm:$0xff]
    %v106 = vld [vmem:[%s2 + $0x18] sm:$0xff]
    %108 = vset.pattern.permute.xlu0 0
    %109 = vperm.xlu0 %108, %v103
    %v110 = vpop.permute.xlu0 %109
    %113 = vset.pattern.permute.xlu0 0
    %114 = vperm.xlu0 %113, %v104
    %v115 = vpop.permute.xlu0 %114
    %118 = vset.pattern.permute.xlu0 0
    %119 = vperm.xlu0 %118, %v105
    %v120 = vpop.permute.xlu0 %119
    %123 = vset.pattern.permute.xlu0 0
    %124 = vperm.xlu0 %123, %v106
    %v125 = vpop.permute.xlu0 %124
    %vm127 = vcmask 23552
    %v129 = vsel %vm127, %v35, 0
    %v132 = vsel %vm127, %v36, 0
    %v135 = vsel %vm127, %v37, 0
    %v138 = vsel %vm127, %v38, 0
    %v141 = vsel %vm127, %v39, 0
    %v144 = vsel %vm127, %v40, 0
    %v147 = vsel %vm127, %v41, 0
    %v150 = vsel %vm127, %v42, 0
    %v153 = vsel %vm127, %v43, 0
    %v156 = vsel %vm127, %v44, 0
    %v159 = vsel %vm127, %v45, 0
    %v162 = vsel %vm127, %v46, 0
    %v165 = vsel %vm127, %v47, 0
    %v168 = vsel %vm127, %v48, 0
    %v171 = vsel %vm127, %v49, 0
    %v174 = vsel %vm127, %v50, 0
    %v177 = vsel %vm127, %v51, 0
    %v180 = vsel %vm127, %v52, 0
    %v183 = vsel %vm127, %v53, 0
    %v186 = vsel %vm127, %v54, 0
    %v189 = vsel %vm127, %v55, 0
    %v192 = vsel %vm127, %v56, 0
    %v195 = vsel %vm127, %v57, 0
    %v198 = vsel %vm127, %v58, 0
    %v201 = vsel %vm127, %v59, 0
    %v204 = vsel %vm127, %v60, 0
    %v207 = vsel %vm127, %v61, 0
    %v210 = vsel %vm127, %v62, 0
    %v213 = vsel %vm127, %v63, 0
    %v216 = vsel %vm127, %v64, 0
    %v219 = vsel %vm127, %v65, 0
    %v222 = vsel %vm127, %v66, 0
    %v225 = vsel %vm127, %v67, 0
    %v228 = vsel %vm127, %v68, 0
    %v231 = vsel %vm127, %v69, 0
    %v234 = vsel %vm127, %v70, 0
    %v237 = vsel %vm127, %v71, 0
    %v240 = vsel %vm127, %v72, 0
    %v243 = vsel %vm127, %v73, 0
    %v246 = vsel %vm127, %v74, 0
    %v249 = vsel %vm127, %v75, 0
    %v252 = vsel %vm127, %v76, 0
    %v255 = vsel %vm127, %v77, 0
    %v258 = vsel %vm127, %v78, 0
    %v261 = vsel %vm127, %v79, 0
    %v264 = vsel %vm127, %v80, 0
    %v267 = vsel %vm127, %v81, 0
    %v270 = vsel %vm127, %v82, 0
    %v273 = vsel %vm127, %v83, 0
    %v276 = vsel %vm127, %v84, 0
    %v279 = vsel %vm127, %v85, 0
    %v282 = vsel %vm127, %v86, 0
    %v285 = vsel %vm127, %v87, 0
    %v288 = vsel %vm127, %v88, 0
    %v291 = vsel %vm127, %v89, 0
    %v294 = vsel %vm127, %v90, 0
    %v297 = vsel %vm127, %v91, 0
    %v300 = vsel %vm127, %v92, 0
    %v303 = vsel %vm127, %v93, 0
    %v306 = vsel %vm127, %v94, 0
    %v309 = vsel %vm127, %v95, 0
    %v312 = vsel %vm127, %v96, 0
    %v315 = vsel %vm127, %v97, 0
    %v318 = vsel %vm127, %v98, 0
    %v321 = vsel %vm127, %v99, 0
    %v324 = vsel %vm127, %v100, 0
    %v327 = vsel %vm127, %v101, 0
    %v330 = vsel %vm127, %v102, 0
    %332 = vmatpush.xpose.msra.mxu0 %v186
    %333 = vmatpush.xpose.msra.mxu0 %v183
    %334 = vmatpush.xpose.msra.mxu0 %v180
    %335 = vmatpush.xpose.msra.mxu0 %v177
    %336 = vmatpush.xpose.msra.mxu0 %v174
    %337 = vmatpush.xpose.msra.mxu0 %v171
    %338 = vmatpush.xpose.msra.mxu0 %v168
    %339 = vmatpush.xpose.msra.mxu0 %v165
    %340 = vmatpush.xpose.msra.mxu0 %v162
    %341 = vmatpush.xpose.msra.mxu0 %v159
    %342 = vmatpush.xpose.msra.mxu0 %v156
    %343 = vmatpush.xpose.msra.mxu0 %v153
    %344 = vmatpush.xpose.msra.mxu0 %v150
    %345 = vmatpush.xpose.msra.mxu0 %v147
    %346 = vmatpush.xpose.msra.mxu0 %v144
    %347 = vmatpush.xpose.msra.mxu0 %v141
    %348 = vmatmul.f32.gmra.mxu0 %v129
    %v349 = vpop.f32.mrf.mxu0
    %v350 = vadd.f32 %v110, %v349
    %351 = vmatmul.f32.gmra.mxu0 %v132
    %v352 = vpop.f32.mrf.mxu0
    %v353 = vadd.f32 %v115, %v352
    %354 = vmatmul.f32.gmra.mxu0 %v135
    %v355 = vpop.f32.mrf.mxu0
    %v356 = vadd.f32 %v120, %v355
    %357 = vmatmul.f32.gmra.mxu0 %v138
    %v358 = vpop.f32.mrf.mxu0
    %v359 = vadd.f32 %v125, %v358
    %360 = vdwg.mxu0
    %361 = vmatpush.xpose.msra.mxu0 %v234
    %362 = vmatpush.xpose.msra.mxu0 %v231
    %363 = vmatpush.xpose.msra.mxu0 %v228
    %364 = vmatpush.xpose.msra.mxu0 %v225
    %365 = vmatpush.xpose.msra.mxu0 %v222
    %366 = vmatpush.xpose.msra.mxu0 %v219
    %367 = vmatpush.xpose.msra.mxu0 %v216
    %368 = vmatpush.xpose.msra.mxu0 %v213
    %369 = vmatpush.xpose.msra.mxu0 %v210
    %370 = vmatpush.xpose.msra.mxu0 %v207
    %371 = vmatpush.xpose.msra.mxu0 %v204
    %372 = vmatpush.xpose.msra.mxu0 %v201
    %373 = vmatpush.xpose.msra.mxu0 %v198
    %374 = vmatpush.xpose.msra.mxu0 %v195
    %375 = vmatpush.xpose.msra.mxu0 %v192
    %376 = vmatpush.xpose.msra.mxu0 %v189
    %377 = vmatmul.f32.gmra.mxu0 %v129
    %v378 = vpop.f32.mrf.mxu0
    %v379 = vadd.f32 %v110, %v378
    %380 = vmatmul.f32.gmra.mxu0 %v132
    %v381 = vpop.f32.mrf.mxu0
    %v382 = vadd.f32 %v115, %v381
    %383 = vmatmul.f32.gmra.mxu0 %v135
    %v384 = vpop.f32.mrf.mxu0
    %v385 = vadd.f32 %v120, %v384
    %386 = vmatmul.f32.gmra.mxu0 %v138
    %v387 = vpop.f32.mrf.mxu0
    %v388 = vadd.f32 %v125, %v387
    %389 = vdwg.mxu0
    %390 = vmatpush.xpose.msra.mxu0 %v282
    %391 = vmatpush.xpose.msra.mxu0 %v279
    %392 = vmatpush.xpose.msra.mxu0 %v276
    %393 = vmatpush.xpose.msra.mxu0 %v273
    %394 = vmatpush.xpose.msra.mxu0 %v270
    %395 = vmatpush.xpose.msra.mxu0 %v267
    %396 = vmatpush.xpose.msra.mxu0 %v264
    %397 = vmatpush.xpose.msra.mxu0 %v261
    %398 = vmatpush.xpose.msra.mxu0 %v258
    %399 = vmatpush.xpose.msra.mxu0 %v255
    %400 = vmatpush.xpose.msra.mxu0 %v252
    %401 = vmatpush.xpose.msra.mxu0 %v249
    %402 = vmatpush.xpose.msra.mxu0 %v246
    %403 = vmatpush.xpose.msra.mxu0 %v243
    %404 = vmatpush.xpose.msra.mxu0 %v240
    %405 = vmatpush.xpose.msra.mxu0 %v237
    %406 = vmatmul.f32.gmra.mxu0 %v129
    %v407 = vpop.f32.mrf.mxu0
    %v408 = vadd.f32 %v110, %v407
    %409 = vmatmul.f32.gmra.mxu0 %v132
    %v410 = vpop.f32.mrf.mxu0
    %v411 = vadd.f32 %v115, %v410
    %412 = vmatmul.f32.gmra.mxu0 %v135
    %v413 = vpop.f32.mrf.mxu0
    %v414 = vadd.f32 %v120, %v413
    %415 = vmatmul.f32.gmra.mxu0 %v138
    %v416 = vpop.f32.mrf.mxu0
    %v417 = vadd.f32 %v125, %v416
    %418 = vdwg.mxu0
    %419 = vmatpush.xpose.msra.mxu0 %v330
    %420 = vmatpush.xpose.msra.mxu0 %v327
    %421 = vmatpush.xpose.msra.mxu0 %v324
    %422 = vmatpush.xpose.msra.mxu0 %v321
    %423 = vmatpush.xpose.msra.mxu0 %v318
    %424 = vmatpush.xpose.msra.mxu0 %v315
    %425 = vmatpush.xpose.msra.mxu0 %v312
    %426 = vmatpush.xpose.msra.mxu0 %v309
    %427 = vmatpush.xpose.msra.mxu0 %v306
    %428 = vmatpush.xpose.msra.mxu0 %v303
    %429 = vmatpush.xpose.msra.mxu0 %v300
    %430 = vmatpush.xpose.msra.mxu0 %v297
    %431 = vmatpush.xpose.msra.mxu0 %v294
    %432 = vmatpush.xpose.msra.mxu0 %v291
    %433 = vmatpush.xpose.msra.mxu0 %v288
    %434 = vmatpush.xpose.msra.mxu0 %v285
    %435 = vmatmul.f32.gmra.mxu0 %v129
    %v436 = vpop.f32.mrf.mxu0
    %v437 = vadd.f32 %v110, %v436
    %438 = vmatmul.f32.gmra.mxu0 %v132
    %v439 = vpop.f32.mrf.mxu0
    %v440 = vadd.f32 %v115, %v439
    %441 = vmatmul.f32.gmra.mxu0 %v135
    %v442 = vpop.f32.mrf.mxu0
    %v443 = vadd.f32 %v120, %v442
    %444 = vmatmul.f32.gmra.mxu0 %v138
    %v445 = vpop.f32.mrf.mxu0
    %v446 = vadd.f32 %v125, %v445
    %447 = vdwg.mxu0
    %v448 = vtanh.pop %v350
    %v449 = vtanh.pop %v379
    %v450 = vtanh.pop %v408
    %v451 = vtanh.pop %v437
    %v452 = vtanh.pop %v353
    %v453 = vtanh.pop %v382
    %v454 = vtanh.pop %v411
    %v455 = vtanh.pop %v440
    %v456 = vtanh.pop %v356
    %v457 = vtanh.pop %v385
    %v458 = vtanh.pop %v414
    %v459 = vtanh.pop %v443
    %v460 = vtanh.pop %v359
    %v461 = vtanh.pop %v388
    %v462 = vtanh.pop %v417
    %v463 = vtanh.pop %v446
    %v464 = vld [vmem:[%s3] sm:$0xff]
    %v465 = vld [vmem:[%s3 + $0x8] sm:$0xff]
    %v466 = vld [vmem:[%s3 + $0x10] sm:$0xff]
    %v467 = vld [vmem:[%s3 + $0x18] sm:$0xff]
    %v468 = vld [vmem:[%s4] sm:$0xff]
    %v469 = vld [vmem:[%s4 + $0x8] sm:$0xff]
    %v470 = vld [vmem:[%s4 + $0x10] sm:$0xff]
    %v471 = vld [vmem:[%s4 + $0x18] sm:$0xff]
    %473 = vset.pattern.permute.xlu0 0
    %474 = vperm.xlu0 %473, %v468
    %v475 = vpop.permute.xlu0 %474
    %478 = vset.pattern.permute.xlu0 0
    %479 = vperm.xlu0 %478, %v469
    %v480 = vpop.permute.xlu0 %479
    %483 = vset.pattern.permute.xlu0 0
    %484 = vperm.xlu0 %483, %v470
    %v485 = vpop.permute.xlu0 %484
    %488 = vset.pattern.permute.xlu0 0
    %489 = vperm.xlu0 %488, %v471
    %v490 = vpop.permute.xlu0 %489
    %vm492 = vcmask 261120
    %v494 = vsel %vm492, %v464, 0
    %v497 = vsel %vm492, %v465, 0
    %v500 = vsel %vm492, %v466, 0
    %v503 = vsel %vm492, %v467, 0
    %505 = vmatpush.msra.mxu0 0.0
    %506 = vmatpush.msra.mxu0 0.0
    %507 = vmatpush.msra.mxu0 0.0
    %508 = vmatpush.msra.mxu0 0.0
    %509 = vmatpush.msra.mxu0 0.0
    %510 = vmatpush.msra.mxu0 0.0
    %511 = vmatpush.msra.mxu0 0.0
    %512 = vmatpush.msra.mxu0 0.0
    %513 = vmatpush.msra.mxu0 0.0
    %514 = vmatpush.msra.mxu0 0.0
    %515 = vmatpush.msra.mxu0 0.0
    %516 = vmatpush.msra.mxu0 0.0
    %517 = vmatpush.msra.mxu0 %v460
    %518 = vmatpush.msra.mxu0 %v456
    %519 = vmatpush.msra.mxu0 %v452
    %520 = vmatpush.msra.mxu0 %v448
    %521 = vmatmul.f32.gmra.mxu0 %v494
    %v522 = vpop.f32.mrf.mxu0
    %v523 = vadd.f32 %v475, %v522
    %524 = vmatmul.f32.gmra.mxu0 %v497
    %v525 = vpop.f32.mrf.mxu0
    %v526 = vadd.f32 %v480, %v525
    %527 = vmatmul.f32.gmra.mxu0 %v500
    %v528 = vpop.f32.mrf.mxu0
    %v529 = vadd.f32 %v485, %v528
    %530 = vmatmul.f32.gmra.mxu0 %v503
    %v531 = vpop.f32.mrf.mxu0
    %v532 = vadd.f32 %v490, %v531
    %533 = vdwg.mxu0
    %534 = vmatpush.msra.mxu0 0.0
    %535 = vmatpush.msra.mxu0 0.0
    %536 = vmatpush.msra.mxu0 0.0
    %537 = vmatpush.msra.mxu0 0.0
    %538 = vmatpush.msra.mxu0 0.0
    %539 = vmatpush.msra.mxu0 0.0
    %540 = vmatpush.msra.mxu0 0.0
    %541 = vmatpush.msra.mxu0 0.0
    %542 = vmatpush.msra.mxu0 0.0
    %543 = vmatpush.msra.mxu0 0.0
    %544 = vmatpush.msra.mxu0 0.0
    %545 = vmatpush.msra.mxu0 0.0
    %546 = vmatpush.msra.mxu0 %v461
    %547 = vmatpush.msra.mxu0 %v457
    %548 = vmatpush.msra.mxu0 %v453
    %549 = vmatpush.msra.mxu0 %v449
    %550 = vmatmul.f32.gmra.mxu0 %v494
    %v551 = vpop.f32.mrf.mxu0
    %v552 = vadd.f32 %v475, %v551
    %553 = vmatmul.f32.gmra.mxu0 %v497
    %v554 = vpop.f32.mrf.mxu0
    %v555 = vadd.f32 %v480, %v554
    %556 = vmatmul.f32.gmra.mxu0 %v500
    %v557 = vpop.f32.mrf.mxu0
    %v558 = vadd.f32 %v485, %v557
    %559 = vmatmul.f32.gmra.mxu0 %v503
    %v560 = vpop.f32.mrf.mxu0
    %v561 = vadd.f32 %v490, %v560
    %562 = vdwg.mxu0
    %563 = vmatpush.msra.mxu0 0.0
    %564 = vmatpush.msra.mxu0 0.0
    %565 = vmatpush.msra.mxu0 0.0
    %566 = vmatpush.msra.mxu0 0.0
    %567 = vmatpush.msra.mxu0 0.0
    %568 = vmatpush.msra.mxu0 0.0
    %569 = vmatpush.msra.mxu0 0.0
    %570 = vmatpush.msra.mxu0 0.0
    %571 = vmatpush.msra.mxu0 0.0
    %572 = vmatpush.msra.mxu0 0.0
    %573 = vmatpush.msra.mxu0 0.0
    %574 = vmatpush.msra.mxu0 0.0
    %575 = vmatpush.msra.mxu0 %v462
    %576 = vmatpush.msra.mxu0 %v458
    %577 = vmatpush.msra.mxu0 %v454
    %578 = vmatpush.msra.mxu0 %v450
    %579 = vmatmul.f32.gmra.mxu0 %v494
    %v580 = vpop.f32.mrf.mxu0
    %v581 = vadd.f32 %v475, %v580
    %582 = vmatmul.f32.gmra.mxu0 %v497
    %v583 = vpop.f32.mrf.mxu0
    %v584 = vadd.f32 %v480, %v583
    %585 = vmatmul.f32.gmra.mxu0 %v500
    %v586 = vpop.f32.mrf.mxu0
    %v587 = vadd.f32 %v485, %v586
    %588 = vmatmul.f32.gmra.mxu0 %v503
    %v589 = vpop.f32.mrf.mxu0
    %v590 = vadd.f32 %v490, %v589
    %591 = vdwg.mxu0
    %592 = vmatpush.msra.mxu0 0.0
    %593 = vmatpush.msra.mxu0 0.0
    %594 = vmatpush.msra.mxu0 0.0
    %595 = vmatpush.msra.mxu0 0.0
    %596 = vmatpush.msra.mxu0 0.0
    %597 = vmatpush.msra.mxu0 0.0
    %598 = vmatpush.msra.mxu0 0.0
    %599 = vmatpush.msra.mxu0 0.0
    %600 = vmatpush.msra.mxu0 0.0
    %601 = vmatpush.msra.mxu0 0.0
    %602 = vmatpush.msra.mxu0 0.0
    %603 = vmatpush.msra.mxu0 0.0
    %604 = vmatpush.msra.mxu0 %v463
    %605 = vmatpush.msra.mxu0 %v459
    %606 = vmatpush.msra.mxu0 %v455
    %607 = vmatpush.msra.mxu0 %v451
    %608 = vmatmul.f32.gmra.mxu0 %v494
    %v609 = vpop.f32.mrf.mxu0
    %v610 = vadd.f32 %v475, %v609
    %611 = vmatmul.f32.gmra.mxu0 %v497
    %v612 = vpop.f32.mrf.mxu0
    %v613 = vadd.f32 %v480, %v612
    %614 = vmatmul.f32.gmra.mxu0 %v500
    %v615 = vpop.f32.mrf.mxu0
    %v616 = vadd.f32 %v485, %v615
    %617 = vmatmul.f32.gmra.mxu0 %v503
    %v618 = vpop.f32.mrf.mxu0
    %v619 = vadd.f32 %v490, %v618
    %620 = vdwg.mxu0
    %v621 = vtanh.pop %v523
    %v622 = vtanh.pop %v552
    %v623 = vtanh.pop %v581
    %v624 = vtanh.pop %v610
    %v625 = vtanh.pop %v526
    %v626 = vtanh.pop %v555
    %v627 = vtanh.pop %v584
    %v628 = vtanh.pop %v613
    %v629 = vtanh.pop %v529
    %v630 = vtanh.pop %v558
    %v631 = vtanh.pop %v587
    %v632 = vtanh.pop %v616
    %v633 = vtanh.pop %v532
    %v634 = vtanh.pop %v561
    %v635 = vtanh.pop %v590
    %v636 = vtanh.pop %v619
    %v637 = vld [vmem:[%s5] sm:$0xff]
    %v638 = vld [vmem:[%s5 + $0x8] sm:$0xff]
    %v639 = vld [vmem:[%s5 + $0x10] sm:$0xff]
    %v640 = vld [vmem:[%s5 + $0x18] sm:$0xff]
    %v641 = vld [vmem:[%s6] sm:$0xff]
    %v642 = vld [vmem:[%s6 + $0x8] sm:$0xff]
    %v643 = vld [vmem:[%s6 + $0x10] sm:$0xff]
    %v644 = vld [vmem:[%s6 + $0x18] sm:$0xff]
    %646 = vset.pattern.permute.xlu0 0
    %647 = vperm.xlu0 %646, %v641
    %v648 = vpop.permute.xlu0 %647
    %651 = vset.pattern.permute.xlu0 0
    %652 = vperm.xlu0 %651, %v642
    %v653 = vpop.permute.xlu0 %652
    %656 = vset.pattern.permute.xlu0 0
    %657 = vperm.xlu0 %656, %v643
    %v658 = vpop.permute.xlu0 %657
    %661 = vset.pattern.permute.xlu0 0
    %662 = vperm.xlu0 %661, %v644
    %v663 = vpop.permute.xlu0 %662
    %v666 = vsel %vm492, %v637, 0
    %v669 = vsel %vm492, %v638, 0
    %v672 = vsel %vm492, %v639, 0
    %v675 = vsel %vm492, %v640, 0
    %677 = vmatpush.msra.mxu0 0.0
    %678 = vmatpush.msra.mxu0 0.0
    %679 = vmatpush.msra.mxu0 0.0
    %680 = vmatpush.msra.mxu0 0.0
    %681 = vmatpush.msra.mxu0 0.0
    %682 = vmatpush.msra.mxu0 0.0
    %683 = vmatpush.msra.mxu0 0.0
    %684 = vmatpush.msra.mxu0 0.0
    %685 = vmatpush.msra.mxu0 0.0
    %686 = vmatpush.msra.mxu0 0.0
    %687 = vmatpush.msra.mxu0 0.0
    %688 = vmatpush.msra.mxu0 0.0
    %689 = vmatpush.msra.mxu0 %v633
    %690 = vmatpush.msra.mxu0 %v629
    %691 = vmatpush.msra.mxu0 %v625
    %692 = vmatpush.msra.mxu0 %v621
    %693 = vmatmul.f32.gmra.mxu0 %v666
    %v694 = vpop.f32.mrf.mxu0
    %v695 = vadd.f32 %v648, %v694
    %696 = vmatmul.f32.gmra.mxu0 %v669
    %v697 = vpop.f32.mrf.mxu0
    %v698 = vadd.f32 %v653, %v697
    %699 = vmatmul.f32.gmra.mxu0 %v672
    %v700 = vpop.f32.mrf.mxu0
    %v701 = vadd.f32 %v658, %v700
    %702 = vmatmul.f32.gmra.mxu0 %v675
    %v703 = vpop.f32.mrf.mxu0
    %v704 = vadd.f32 %v663, %v703
    %705 = vdwg.mxu0
    %706 = vmatpush.msra.mxu0 0.0
    %707 = vmatpush.msra.mxu0 0.0
    %708 = vmatpush.msra.mxu0 0.0
    %709 = vmatpush.msra.mxu0 0.0
    %710 = vmatpush.msra.mxu0 0.0
    %711 = vmatpush.msra.mxu0 0.0
    %712 = vmatpush.msra.mxu0 0.0
    %713 = vmatpush.msra.mxu0 0.0
    %714 = vmatpush.msra.mxu0 0.0
    %715 = vmatpush.msra.mxu0 0.0
    %716 = vmatpush.msra.mxu0 0.0
    %717 = vmatpush.msra.mxu0 0.0
    %718 = vmatpush.msra.mxu0 %v634
    %719 = vmatpush.msra.mxu0 %v630
    %720 = vmatpush.msra.mxu0 %v626
    %721 = vmatpush.msra.mxu0 %v622
    %722 = vmatmul.f32.gmra.mxu0 %v666
    %v723 = vpop.f32.mrf.mxu0
    %v724 = vadd.f32 %v648, %v723
    %725 = vmatmul.f32.gmra.mxu0 %v669
    %v726 = vpop.f32.mrf.mxu0
    %v727 = vadd.f32 %v653, %v726
    %728 = vmatmul.f32.gmra.mxu0 %v672
    %v729 = vpop.f32.mrf.mxu0
    %v730 = vadd.f32 %v658, %v729
    %731 = vmatmul.f32.gmra.mxu0 %v675
    %v732 = vpop.f32.mrf.mxu0
    %v733 = vadd.f32 %v663, %v732
    %734 = vdwg.mxu0
    %735 = vmatpush.msra.mxu0 0.0
    %736 = vmatpush.msra.mxu0 0.0
    %737 = vmatpush.msra.mxu0 0.0
    %738 = vmatpush.msra.mxu0 0.0
    %739 = vmatpush.msra.mxu0 0.0
    %740 = vmatpush.msra.mxu0 0.0
    %741 = vmatpush.msra.mxu0 0.0
    %742 = vmatpush.msra.mxu0 0.0
    %743 = vmatpush.msra.mxu0 0.0
    %744 = vmatpush.msra.mxu0 0.0
    %745 = vmatpush.msra.mxu0 0.0
    %746 = vmatpush.msra.mxu0 0.0
    %747 = vmatpush.msra.mxu0 %v635
    %748 = vmatpush.msra.mxu0 %v631
    %749 = vmatpush.msra.mxu0 %v627
    %750 = vmatpush.msra.mxu0 %v623
    %751 = vmatmul.f32.gmra.mxu0 %v666
    %v752 = vpop.f32.mrf.mxu0
    %v753 = vadd.f32 %v648, %v752
    %754 = vmatmul.f32.gmra.mxu0 %v669
    %v755 = vpop.f32.mrf.mxu0
    %v756 = vadd.f32 %v653, %v755
    %757 = vmatmul.f32.gmra.mxu0 %v672
    %v758 = vpop.f32.mrf.mxu0
    %v759 = vadd.f32 %v658, %v758
    %760 = vmatmul.f32.gmra.mxu0 %v675
    %v761 = vpop.f32.mrf.mxu0
    %v762 = vadd.f32 %v663, %v761
    %763 = vdwg.mxu0
    %764 = vmatpush.msra.mxu0 0.0
    %765 = vmatpush.msra.mxu0 0.0
    %766 = vmatpush.msra.mxu0 0.0
    %767 = vmatpush.msra.mxu0 0.0
    %768 = vmatpush.msra.mxu0 0.0
    %769 = vmatpush.msra.mxu0 0.0
    %770 = vmatpush.msra.mxu0 0.0
    %771 = vmatpush.msra.mxu0 0.0
    %772 = vmatpush.msra.mxu0 0.0
    %773 = vmatpush.msra.mxu0 0.0
    %774 = vmatpush.msra.mxu0 0.0
    %775 = vmatpush.msra.mxu0 0.0
    %776 = vmatpush.msra.mxu0 %v636
    %777 = vmatpush.msra.mxu0 %v632
    %778 = vmatpush.msra.mxu0 %v628
    %779 = vmatpush.msra.mxu0 %v624
    %780 = vmatmul.f32.gmra.mxu0 %v666
    %v781 = vpop.f32.mrf.mxu0
    %v782 = vadd.f32 %v648, %v781
    %783 = vmatmul.f32.gmra.mxu0 %v669
    %v784 = vpop.f32.mrf.mxu0
    %v785 = vadd.f32 %v653, %v784
    %786 = vmatmul.f32.gmra.mxu0 %v672
    %v787 = vpop.f32.mrf.mxu0
    %v788 = vadd.f32 %v658, %v787
    %789 = vmatmul.f32.gmra.mxu0 %v675
    %v790 = vpop.f32.mrf.mxu0
    %v791 = vadd.f32 %v663, %v790
    %792 = vdwg.mxu0
    %v793 = vtanh.pop %v695
    %v794 = vtanh.pop %v724
    %v795 = vtanh.pop %v753
    %v796 = vtanh.pop %v782
    %v797 = vtanh.pop %v698
    %v798 = vtanh.pop %v727
    %v799 = vtanh.pop %v756
    %v800 = vtanh.pop %v785
    %v801 = vtanh.pop %v701
    %v802 = vtanh.pop %v730
    %v803 = vtanh.pop %v759
    %v804 = vtanh.pop %v788
    %v805 = vtanh.pop %v704
    %v806 = vtanh.pop %v733
    %v807 = vtanh.pop %v762
    %v808 = vtanh.pop %v791
    %v809 = vld [vmem:[%s7] sm:$0xff]
    %v810 = vld [vmem:[%s7 + $0x8] sm:$0xff]
    %v811 = vld [vmem:[%s7 + $0x10] sm:$0xff]
    %v812 = vld [vmem:[%s7 + $0x18] sm:$0xff]
    %v813 = vld [vmem:[#allocation2] sm:$0x1]
    %815 = vset.pattern.permute.xlu0 0
    %816 = vperm.xlu0 %815, %v809
    %v817 = vpop.permute.xlu0 %816
    %820 = vset.pattern.permute.xlu0 0
    %821 = vperm.xlu0 %820, %v810
    %v822 = vpop.permute.xlu0 %821
    %825 = vset.pattern.permute.xlu0 0
    %826 = vperm.xlu0 %825, %v811
    %v827 = vpop.permute.xlu0 %826
    %830 = vset.pattern.permute.xlu0 0
    %831 = vperm.xlu0 %830, %v812
    %v832 = vpop.permute.xlu0 %831
    %v834 = vmul.f32 %v817, %v793
    %v835 = vmul.f32 %v817, %v794
    %v836 = vmul.f32 %v817, %v795
    %v837 = vmul.f32 %v817, %v796
    %v838 = vmul.f32 %v822, %v797
    %v839 = vmul.f32 %v822, %v798
    %v840 = vmul.f32 %v822, %v799
    %v841 = vmul.f32 %v822, %v800
    %v842 = vmul.f32 %v827, %v801
    %v843 = vmul.f32 %v827, %v802
    %v844 = vmul.f32 %v827, %v803
    %v845 = vmul.f32 %v827, %v804
    %v846 = vmul.f32 %v832, %v805
    %v847 = vmul.f32 %v832, %v806
    %v848 = vmul.f32 %v832, %v807
    %v849 = vmul.f32 %v832, %v808
    %v850 = vadd.f32 %v834, %v838
    %v851 = vadd.f32 %v850, %v842
    %v852 = vadd.f32 %v851, %v846
    %v853 = vrot.slane %v852, 4
    %v854 = vadd.f32 %v852, %v853
    %v855 = vrot.slane %v854, 2
    %v856 = vadd.f32 %v854, %v855
    %v857 = vrot.slane %v856, 1
    %v858 = vadd.f32 %v856, %v857
    %v859 = vadd.f32 %v835, %v839
    %v860 = vadd.f32 %v859, %v843
    %v861 = vadd.f32 %v860, %v847
    %v862 = vrot.slane %v861, 4
    %v863 = vadd.f32 %v861, %v862
    %v864 = vrot.slane %v863, 2
    %v865 = vadd.f32 %v863, %v864
    %v866 = vrot.slane %v865, 1
    %v867 = vadd.f32 %v865, %v866
    %v868 = vadd.f32 %v836, %v840
    %v869 = vadd.f32 %v868, %v844
    %v870 = vadd.f32 %v869, %v848
    %v871 = vrot.slane %v870, 4
    %v872 = vadd.f32 %v870, %v871
    %v873 = vrot.slane %v872, 2
    %v874 = vadd.f32 %v872, %v873
    %v875 = vrot.slane %v874, 1
    %v876 = vadd.f32 %v874, %v875
    %v877 = vadd.f32 %v837, %v841
    %v878 = vadd.f32 %v877, %v845
    %v879 = vadd.f32 %v878, %v849
    %v880 = vrot.slane %v879, 4
    %v881 = vadd.f32 %v879, %v880
    %v882 = vrot.slane %v881, 2
    %v883 = vadd.f32 %v881, %v882
    %v884 = vrot.slane %v883, 1
    %v885 = vadd.f32 %v883, %v884
    %887 = vset.pattern.permute.xlu0 0
    %888 = vperm.xlu0 %887, %v813
    %v889 = vpop.permute.xlu0 %888
    %v891 = vperm.slane %v889, 0
    %v892 = vadd.f32 %v858, %v891
    %v893 = vadd.f32 %v867, %v891
    %v894 = vadd.f32 %v876, %v891
    %v895 = vadd.f32 %v885, %v891
    %v900 = vrot.slane %v893, 7
    %v901 = vrot.slane %v894, 6
    %v902 = vrot.slane %v895, 5
    %vm903 = vcmask 1040384
    %v904 = vsel %vm903, %v892, %v900
    %vm905 = vcmask 1042434
    %v906 = vsel %vm905, %v901, %v902
    %vm907 = vcmask 1041408
    %v908 = vsel %vm907, %v904, %v906
    %v910 = vlaneseq
    %vm911 = vcmp.ge.s32.totalorder %v910, 0
    %vm912 = vcmp.lt.s32.totalorder %v910, 512
    %vm913 = vmand %vm911, %vm912
    %914 = vst.msk [vmem:[#allocation3] sm:$0xf] %vm913, %v908
    // Predicated region
    $region38: #{tpu_custom_call.1} parent=1 // pred_check
      _
    $region39: #{tpu_custom_call.1} parent=1 // pred_check_branch
      %916 = sbr.rel (0) target = $region41
    $region40: #{tpu_custom_call.1} parent=1 // pred_region
      %918 = vsyncadd [#allocation4], 0
      %s920 = sshll.u32 [#allocation3], 4
      %s921 = int_to_ptr.vmem [resolvable:$true] %s920
      %s922 = sshll.u32 %s9, 4
      %s923 = int_to_ptr.hbm [resolvable:$true] %s922
      %925 = dma.vmem_to_hbm [thread:$0]  %s921, 64, %s923, [#allocation4]
    $region41: #{tpu_custom_call.1} parent=1 // pred_fallthru
      _
    // Predicated region
    $region42: #{tpu_custom_call.1} parent=1 // pred_check
      _
    $region43: #{tpu_custom_call.1} parent=1 // pred_check_branch
      %927 = sbr.rel (0) target = $region45
    $region44: #{tpu_custom_call.1} parent=1 // pred_region
      %929 = dma.done [#allocation4], 64
    $region45: #{tpu_custom_call.1} parent=1 // pred_fallthru
      _
    %930 = vsyncpa [#allocation4], 1

</llo_original>
